<compile_context>
chip_gen: v6e
topology: v6e:2x2x1
jax: 0.10.0
libtpu: 0.0.40
codegen_flags: <defaults>
</compile_context>

<pallas_src>
import functools

import jax
import jax.numpy as jnp
from jax import lax
from jax.experimental import pallas as pl
from jax.experimental.pallas import tpu as pltpu


def _pick_tile(dim, target, granule=8):
    """Largest multiple-of-`granule` divisor of `dim` that is <= target.

    Small shapes (dim <= target) use the full dim (always a legal block). Large shapes
    get an aligned tile instead of a whole-dim block that could blow VMEM.
    """
    if dim <= target:
        return dim
    t = (target // granule) * granule
    while t >= granule:
        if dim % t == 0:
            return t
        t -= granule
    return dim  # TODO(synk): pad instead (VMEM risk on v7x for huge non-divisible dims)


# ---------------------------------------------------------------------------
# Projections: resident-weight GEMM (grid over M only, bf16 MXU, f32 accumulate)
# ---------------------------------------------------------------------------

def _linear_kernel(x_ref, w_ref, o_ref):
    x = x_ref[...].astype(jnp.bfloat16)
    w = w_ref[...].astype(jnp.bfloat16)
    o_ref[...] = jnp.dot(x, w, preferred_element_type=jnp.float32).astype(o_ref.dtype)


def _linear_bias_kernel(x_ref, w_ref, b_ref, o_ref):
    x = x_ref[...].astype(jnp.bfloat16)
    w = w_ref[...].astype(jnp.bfloat16)
    acc = jnp.dot(x, w, preferred_element_type=jnp.float32) + b_ref[...]
    o_ref[...] = acc.astype(o_ref.dtype)


def linear(x2d, w_t, bias=None, *, tm=512):
    """y = x2d @ w_t (+ bias). Whole weight stays resident in VMEM; grid only over rows."""
    M, K = x2d.shape
    Kw, N = w_t.shape
    assert K == Kw
    tm = _pick_tile(M, tm)
    grid = (M // tm,)

    x_spec = pl.BlockSpec((tm, K), lambda i: (i, 0))
    w_spec = pl.BlockSpec((K, N), lambda i: (0, 0))      # resident weight (constant index)
    o_spec = pl.BlockSpec((tm, N), lambda i: (i, 0))
    cparams = pltpu.CompilerParams(dimension_semantics=("parallel",))

    if bias is None:
        return pl.pallas_call(
            _linear_kernel,
            out_shape=jax.ShapeDtypeStruct((M, N), x2d.dtype),
            grid_spec=pltpu.PrefetchScalarGridSpec(
                num_scalar_prefetch=0, grid=grid,
                in_specs=[x_spec, w_spec],
                out_specs=o_spec),
            compiler_params=cparams,
        )(x2d, w_t)

    bias2d = bias.reshape(1, N).astype(jnp.float32)
    b_spec = pl.BlockSpec((1, N), lambda i: (0, 0))
    return pl.pallas_call(
        _linear_bias_kernel,
        out_shape=jax.ShapeDtypeStruct((M, N), x2d.dtype),
        grid_spec=pltpu.PrefetchScalarGridSpec(
            num_scalar_prefetch=0, grid=grid,
            in_specs=[x_spec, w_spec, b_spec],
            out_specs=o_spec),
        compiler_params=cparams,
    )(x2d, w_t, bias2d)


# ---------------------------------------------------------------------------
# Flash-style attention core on head-grouped (lane-dense) layout
#   q:  (b, n,     heads*dim_head)
#   kv: (b, n_ctx, 2*heads*dim_head)   -> k | v split inside the kernel
#   out:(b, n,     heads*dim_head)
# ---------------------------------------------------------------------------

def _flash_kernel(q_ref, kv_ref, o_ref, m_ref, l_ref, acc_ref,
                  *, scale, heads, dim_head):
    kv_i = pl.program_id(2)
    inner = heads * dim_head

    @pl.when(kv_i == 0)
    def _():
        m_ref[...] = jnp.full(m_ref.shape, -jnp.inf, m_ref.dtype)
        l_ref[...] = jnp.zeros(l_ref.shape, l_ref.dtype)
        acc_ref[...] = jnp.zeros(acc_ref.shape, acc_ref.dtype)

    # Scale folded into q once per block; bf16 operands for the MXU.
    q_all = (q_ref[0] * scale).astype(jnp.bfloat16)        # (tq,  H*D)
    kv_all = kv_ref[0]                                     # (tkv, 2*H*D)
    k_all = kv_all[:, :inner].astype(jnp.bfloat16)         # (tkv, H*D)
    v_all = kv_all[:, inner:].astype(jnp.bfloat16)         # (tkv, H*D)

    for hh in range(heads):                                # static, unrolled
        sl = slice(hh * dim_head, (hh + 1) * dim_head)
        q = q_all[:, sl]                                   # (tq,  D)
        k = k_all[:, sl]                                   # (tkv, D)
        v = v_all[:, sl]                                   # (tkv, D)

        # q k^T without an explicit transpose (contract trailing d of both operands).
        s = lax.dot_general(q, k, (((1,), (1,)), ((), ())),
                            preferred_element_type=jnp.float32)        # (tq, tkv) f32

        m_prev = m_ref[hh]                                             # (tq, 1)
        m_new = jnp.maximum(m_prev, jnp.max(s, axis=-1, keepdims=True))
        alpha = jnp.exp(m_prev - m_new)                                # (tq, 1)
        p = jnp.exp(s - m_new)                                         # (tq, tkv) f32

        l_ref[hh] = alpha * l_ref[hh] + jnp.sum(p, axis=-1, keepdims=True)
        acc_ref[hh] = alpha * acc_ref[hh] + jnp.dot(
            p.astype(jnp.bfloat16), v, preferred_element_type=jnp.float32)
        m_ref[hh] = m_new

    @pl.when(kv_i == pl.num_programs(2) - 1)
    def _():
        # Exact normalization (once per q tile); single lane-dense full-width store.
        outs = [acc_ref[hh] / l_ref[hh] for hh in range(heads)]
        o_ref[0] = jnp.concatenate(outs, axis=-1).astype(o_ref.dtype)


def flash_attention(q, kv, scale, *, heads, dim_head):
    b, n, inner = q.shape
    assert inner == heads * dim_head
    n_ctx = kv.shape[1]
    assert kv.shape[2] == 2 * inner

    tq = _pick_tile(n, 256)
    tkv = _pick_tile(n_ctx, 256)
    grid = (b, n // tq, n_ctx // tkv)

    kernel = functools.partial(_flash_kernel, scale=scale,
                               heads=heads, dim_head=dim_head)
    return pl.pallas_call(
        kernel,
        out_shape=jax.ShapeDtypeStruct((b, n, inner), q.dtype),
        grid_spec=pltpu.PrefetchScalarGridSpec(
            num_scalar_prefetch=0, grid=grid,
            in_specs=[
                pl.BlockSpec((1, tq, inner), lambda bi, qi, ki: (bi, qi, 0)),
                pl.BlockSpec((1, tkv, 2 * inner), lambda bi, qi, ki: (bi, ki, 0)),
            ],
            out_specs=pl.BlockSpec((1, tq, inner), lambda bi, qi, ki: (bi, qi, 0)),
            scratch_shapes=[
                pltpu.VMEM((heads, tq, 1), jnp.float32),         # running max
                pltpu.VMEM((heads, tq, 1), jnp.float32),         # running denom
                pltpu.VMEM((heads, tq, dim_head), jnp.float32),  # output accumulator
            ]),
        compiler_params=pltpu.CompilerParams(
            dimension_semantics=("parallel", "parallel", "arbitrary")),
    )(q, kv)


# ---------------------------------------------------------------------------
# Module wrapper (only free reshapes in the wrapper; no transposes / splits)
# ---------------------------------------------------------------------------

class AttentionPallas:
    def __init__(self, query_dim, context_dim=None, heads=8, dim_head=64, key=None):
        inner_dim = dim_head * heads
        context_dim = query_dim if context_dim is None else context_dim
        self.scale = dim_head ** (-0.5)
        self.heads = heads
        self.dim_head = dim_head
        self.query_dim = query_dim
        self.inner_dim = inner_dim

        key = jax.random.PRNGKey(42) if key is None else key
        k1, k2, k3, k4 = jax.random.split(key, 4)
        # PyTorch Linear weight shape: (out_features, in_features).
        self.wq = 0.02 * jax.random.normal(k1, (inner_dim, query_dim), jnp.float32)
        self.wkv = 0.02 * jax.random.normal(k2, (2 * inner_dim, context_dim), jnp.float32)
        self.wo = 0.02 * jax.random.normal(k3, (query_dim, inner_dim), jnp.float32)
        self.bo = 0.02 * jax.random.normal(k4, (query_dim,), jnp.float32)
        # One-time (K, N)-layout bf16 copies so the GEMM kernels feed the MXU directly.
        self.wq_t = self.wq.T.astype(jnp.bfloat16)
        self.wkv_t = self.wkv.T.astype(jnp.bfloat16)
        self.wo_t = self.wo.T.astype(jnp.bfloat16)

    def __call__(self, x, context=None, mask=None):
        if mask is not None:
            # TODO(synk): boolean mask path (masked_fill_ with -finfo.max) not implemented.
            raise NotImplementedError("mask path not implemented")

        b, n, _ = x.shape
        context = x if context is None else context
        n_ctx = context.shape[1]
        inner = self.inner_dim

        # Projections (resident-weight Pallas GEMMs, bf16 MXU, no bias for q / kv).
        q = linear(x.reshape(b * n, -1), self.wq_t)                   # (b*n, H*D)
        kv = linear(context.reshape(b * n_ctx, -1), self.wkv_t)       # (b*n_ctx, 2*H*D)

        # Free (metadata-only) reshapes: head-grouped layout consumed directly by the kernel.
        q3 = q.reshape(b, n, inner)
        kv3 = kv.reshape(b, n_ctx, 2 * inner)

        out = flash_attention(q3, kv3, self.scale,
                              heads=self.heads, dim_head=self.dim_head)  # (b, n, H*D)

        # Output projection with bias (Pallas GEMM) straight off the kernel's layout.
        y = linear(out.reshape(b * n, inner), self.wo_t, self.bo)
        return y.reshape(b, n, self.query_dim)


# ---------------------------------------------------------------------------
# Reference (plain JAX, f32) for a sanity check
# ---------------------------------------------------------------------------

def reference_forward(mod, x):
    b, n, _ = x.shape
    h, d = mod.heads, mod.dim_head
    q = x @ mod.wq.T
    kv = x @ mod.wkv.T
    k_, v_ = jnp.split(kv, 2, axis=-1)

    def split_heads(t):
        return t.reshape(b, n, h, d).transpose(0, 2, 1, 3).reshape(b * h, n, d)

    qh, kh, vh = map(split_heads, (q, k_, v_))
    sim = jnp.einsum('bid,bjd->bij', qh, kh) * mod.scale
    attn = jax.nn.softmax(sim, axis=-1)
    out = jnp.einsum('bij,bjd->bid', attn, vh)
    out = out.reshape(b, h, n, d).transpose(0, 2, 1, 3).reshape(b, n, h * d)
    return out @ mod.wo.T + mod.bo


if __name__ == "__main__":
    key = jax.random.PRNGKey(0)
    kx, kp = jax.random.split(key)

    B, N, QUERY_DIM = 2, 16, 32
    HEADS, DIM_HEAD = 4, 16

    x = jax.random.normal(kx, (B, N, QUERY_DIM), jnp.float32)
    mod = AttentionPallas(query_dim=QUERY_DIM, heads=HEADS, dim_head=DIM_HEAD, key=kp)

    y = jax.block_until_ready(mod(x))
    y_ref = reference_forward(mod, x)

    assert y.shape == (B, N, QUERY_DIM)
    max_err = float(jnp.max(jnp.abs(y - y_ref)))
    # bf16 MXU operands vs f32 reference -> slightly looser tolerance than pure f32.
    assert max_err < 5e-3, f"mismatch vs reference: max abs err {max_err}"

    print("KERNEL_OK")
</pallas_src>

<mosaic_0001>
module attributes {stable_mosaic.version = 11 : i64} {
  func.func @_linear_kernel(%arg0: i32, %arg1: memref<32x32xf32, #tpu.memory_space<vmem>>, %arg2: memref<32x64xbf16, #tpu.memory_space<vmem>>, %arg3: memref<32x64xf32, #tpu.memory_space<vmem>>) attributes {dimension_semantics = [#tpu.dimension_semantics<parallel>], iteration_bounds = array<i64: 1>, scalar_prefetch = 0 : i64, scratch_operands = 0 : i64, tpu.core_type = #tpu.core_type<tc>, window_params = [{transform_indices = @transform_0, window_bounds = array<i64: 32, 32>}, {pipeline_mode = #tpu.pipeline_mode<synchronous>, transform_indices = @transform_1, window_bounds = array<i64: 32, 64>}, {transform_indices = @transform_2, window_bounds = array<i64: 32, 64>}]} {
    %c0 = arith.constant 0 : index
    %c0_0 = arith.constant 0 : index
    %0 = vector.load %arg1[%c0, %c0_0] : memref<32x32xf32, #tpu.memory_space<vmem>>, vector<32x32xf32>
    %1 = arith.truncf %0 : vector<32x32xf32> to vector<32x32xbf16>
    %c0_1 = arith.constant 0 : index
    %c0_2 = arith.constant 0 : index
    %2 = vector.load %arg2[%c0_1, %c0_2] : memref<32x64xbf16, #tpu.memory_space<vmem>>, vector<32x64xbf16>
    %cst = arith.constant dense<0.000000e+00> : vector<32x64xf32>
    %3 = tpu.matmul %1, %2, %cst {dimension_numbers = #tpu.dot_dimension_numbers<[1], [0], [0], [1], [0, 0, 1, 1], [], []>} : vector<32x32xbf16>, vector<32x64xbf16>, vector<32x64xf32> -> vector<32x64xf32>
    %c0_3 = arith.constant 0 : index
    %c0_4 = arith.constant 0 : index
    %4 = vector.load %arg3[%c0_3, %c0_4] : memref<32x64xf32, #tpu.memory_space<vmem>>, vector<32x64xf32>
    tpu.vector_store %arg3[%c0_3, %c0_4], %3 {strides = array<i32>} : memref<32x64xf32, #tpu.memory_space<vmem>>, vector<32x64xf32>,
    return
  }
  func.func @transform_0(%arg0: i32) -> (i32, i32) {
    %c0_i32 = arith.constant 0 : i32
    %c0_i32_0 = arith.constant 0 : i32
    return %arg0, %c0_i32 : i32, i32
  }
  func.func @transform_1(%arg0: i32) -> (i32, i32) {
    %c0_i32 = arith.constant 0 : i32
    %c0_i32_0 = arith.constant 0 : i32
    %c0_i32_1 = arith.constant 0 : i32
    return %c0_i32, %c0_i32_0 : i32, i32
  }
  func.func @transform_2(%arg0: i32) -> (i32, i32) {
    %c0_i32 = arith.constant 0 : i32
    %c0_i32_0 = arith.constant 0 : i32
    return %arg0, %c0_i32 : i32, i32
  }
}

</mosaic_0001>

<llo_original>
// kernel: tpu_custom_call.1
$region0: #{tpu_custom_call.1}
  #allocation0 [shape = 'u32[]', space=smem, size = 0x4, offset = 0x4, fixed_abs, tag = 'smem constant byte address 0x4 - core index']
  #allocation1 [shape = 'u32[144,128]{1,0:T(1,128)}', space=vmem, size = 0x12000, scoped, tag = 'internal scratch']
  %s0 = inlined_call_operand.hbm [shape: f32[32,32], index: 0, kind: input, shape index: {}]
  %s1 = inlined_call_operand.hbm [shape: bf16[32,64], index: 1, kind: input, shape index: {}]
  %s2 = inlined_call_operand.hbm [shape: f32[32,64], index: 2, kind: output, shape index: {}]
  %s3 = sld [smem:[#allocation0]]
  $region26: #{tpu_custom_call.1} parent=0
    _
  %s5 = ssub.s32 1, %s3
  %s6 = scalar_select 0, %s5, %s3
  $region1: #{tpu_custom_call.1} parent=0
    #allocation2 [shape = 'u8[16384]{0}', space=vmem, size = 0x4000, scoped, tag = 'input window, operand 0, single buffered']
    #allocation3 [shape = 's32[1]{0}', space=sflag, size = 0x4, scoped, tag = 'scoped memory for tpu_custom_call.1']
    #allocation4 [shape = 's32[1]{0}', space=sflag, size = 0x4, scoped, tag = 'scoped memory for tpu_custom_call.1']
    #allocation5 [shape = 'u8[8192]{0}', space=vmem, size = 0x2000, scoped, tag = 'input window, operand 1, single buffered']
    #allocation6 [shape = 's32[1]{0}', space=sflag, size = 0x4, scoped, tag = 'scoped memory for tpu_custom_call.1']
    #allocation7 [shape = 'u8[16384]{0}', space=vmem, size = 0x4000, scoped, tag = 'output window, operand 0, single buffered']
    %7 = vsyncpa [#allocation3], 0
    %8 = vsyncpa [#allocation6], 0
    %9 = vsyncpa [#allocation4], 0
    // Predicated region
    $region2: #{tpu_custom_call.1} parent=1 // pred_check
      _
    $region3: #{tpu_custom_call.1} parent=1 // pred_check_branch
      %11 = sbr.rel (0) target = $region5
    $region4: #{tpu_custom_call.1} parent=1 // pred_region
      %s13 = ssub.s32 512, 512
      %14 = vsyncadd [#allocation3], %s13
      %s15 = sshll.u32 [#allocation2], 4
      %s16 = int_to_ptr.vmem [resolvable:$true] %s15
      %21 = dma.hbm_to_vmem [thread:$0]  %s0, 512, %s16, [#allocation3], 128, 128, 8
    $region5: #{tpu_custom_call.1} parent=1 // pred_fallthru
      _
    // Predicated region
    $region6: #{tpu_custom_call.1} parent=1 // pred_check
      _
    $region7: #{tpu_custom_call.1} parent=1 // pred_check_branch
      %23 = sbr.rel (0) target = $region9
    $region8: #{tpu_custom_call.1} parent=1 // pred_region
      %s25 = ssub.s32 256, 256
      %26 = vsyncadd [#allocation6], %s25
      %s27 = sshll.u32 [#allocation5], 4
      %s28 = int_to_ptr.vmem [resolvable:$true] %s27
      %33 = dma.hbm_to_vmem [thread:$0]  %s1, 256, %s28, [#allocation6], 64, 64, 4
    $region9: #{tpu_custom_call.1} parent=1 // pred_fallthru
      _
    // Predicated region
    $region10: #{tpu_custom_call.1} parent=1 // pred_check
      _
    $region11: #{tpu_custom_call.1} parent=1 // pred_check_branch
      %35 = sbr.rel (0) target = $region13
    $region12: #{tpu_custom_call.1} parent=1 // pred_region
      %36 = dma.done [#allocation3], 512
    $region13: #{tpu_custom_call.1} parent=1 // pred_fallthru
      _
    // Predicated region
    $region14: #{tpu_custom_call.1} parent=1 // pred_check
      _
    $region15: #{tpu_custom_call.1} parent=1 // pred_check_branch
      %38 = sbr.rel (0) target = $region17
    $region16: #{tpu_custom_call.1} parent=1 // pred_region
      %39 = dma.done [#allocation6], 256
    $region17: #{tpu_custom_call.1} parent=1 // pred_fallthru
      _
    %v41 = vld [vmem:[#allocation2] sm:$0xff]
    %v42 = vld [vmem:[#allocation2 + $0x8] sm:$0xff]
    %v43 = vld [vmem:[#allocation2 + $0x10] sm:$0xff]
    %v44 = vld [vmem:[#allocation2 + $0x18] sm:$0xff]
    %v45 = vpack.c.bf16 %v42, %v41
    %v46 = vpack.c.bf16 %v44, %v43
    %v47 = vld [vmem:[#allocation5] sm:$0xf]
    %v48 = vld [vmem:[#allocation5 + $0x4] sm:$0xf]
    %v49 = vld [vmem:[#allocation5 + $0x8] sm:$0xf]
    %v50 = vld [vmem:[#allocation5 + $0xc] sm:$0xf]
    %v55 = vunpack.c.l.b16 %v47
    %v56 = vunpack.c.l.b16 %v48
    %v57 = vunpack.c.l.b16 %v49
    %v58 = vunpack.c.l.b16 %v50
    %v59 = vpack.c.b16 %v56, %v55
    %v60 = vpack.c.b16 %v58, %v57
    %vm63 = vcmask 261120
    %v65 = vsel %vm63, %v45, 0
    %v68 = vsel %vm63, %v46, 0
    %70 = vmatprep.subr.bf16.mxu0 0
    %71 = vmatpush1.bf16.msra.mxu0 0
    %72 = vmatprep.subr.bf16.mxu0 0
    %73 = vmatpush1.bf16.msra.mxu0 0
    %74 = vmatprep.subr.bf16.mxu0 0
    %75 = vmatpush1.bf16.msra.mxu0 0
    %76 = vmatprep.subr.bf16.mxu0 0
    %77 = vmatpush1.bf16.msra.mxu0 0
    %78 = vmatprep.subr.bf16.mxu0 0
    %79 = vmatpush1.bf16.msra.mxu0 0
    %80 = vmatprep.subr.bf16.mxu0 0
    %81 = vmatpush1.bf16.msra.mxu0 0
    %82 = vmatprep.subr.bf16.mxu0 0
    %83 = vmatpush1.bf16.msra.mxu0 %v60
    %84 = vmatprep.subr.bf16.mxu0 0
    %85 = vmatpush1.bf16.msra.mxu0 %v59
    %86 = vmatprep.subr.bf16.mxu0 0
    %87 = vmatpush2.bf16.msra.mxu0 0
    %88 = vmatprep.subr.bf16.mxu0 0
    %89 = vmatpush2.bf16.msra.mxu0 0
    %90 = vmatprep.subr.bf16.mxu0 0
    %91 = vmatpush2.bf16.msra.mxu0 0
    %92 = vmatprep.subr.bf16.mxu0 0
    %93 = vmatpush2.bf16.msra.mxu0 0
    %94 = vmatprep.subr.bf16.mxu0 0
    %95 = vmatpush2.bf16.msra.mxu0 0
    %96 = vmatprep.subr.bf16.mxu0 0
    %97 = vmatpush2.bf16.msra.mxu0 0
    %98 = vmatprep.subr.bf16.mxu0 0
    %99 = vmatpush2.bf16.msra.mxu0 0
    %100 = vmatprep.subr.bf16.mxu0 0
    %101 = vmatpush2.bf16.msra.mxu0 0
    %102 = vmatprep.mubr.bf16.mxu0 0
    %103 = vmatmul.mubr.bf16.gmra.mxu0 %v65
    %v104 = vpop.f32.mrf.mxu0
    %v105 = vadd.f32 0.0, %v104
    %v106 = vpop.f32.mrf.mxu0
    %v107 = vpop.f32.mrf.mxu0
    %v108 = vadd.f32 0.0, %v107
    %v109 = vpop.f32.mrf.mxu0
    %110 = vmatprep.mubr.bf16.mxu0 0
    %111 = vmatmul.mubr.bf16.gmra.mxu0 %v68
    %v112 = vpop.f32.mrf.mxu0
    %v113 = vadd.f32 0.0, %v112
    %v114 = vpop.f32.mrf.mxu0
    %v115 = vpop.f32.mrf.mxu0
    %v116 = vadd.f32 0.0, %v115
    %v117 = vpop.f32.mrf.mxu0
    %118 = vdwg.mxu0
    %vm119 = vcmask 523264
    %120 = vst.msk [vmem:[#allocation7] sm:$0xff] %vm119, %v105
    %121 = vst.msk [vmem:[#allocation7 + $0x8] sm:$0xff] %vm119, %v108
    %122 = vst.msk [vmem:[#allocation7 + $0x10] sm:$0xff] %vm119, %v113
    %123 = vst.msk [vmem:[#allocation7 + $0x18] sm:$0xff] %vm119, %v116
    // Predicated region
    $region18: #{tpu_custom_call.1} parent=1 // pred_check
      _
    $region19: #{tpu_custom_call.1} parent=1 // pred_check_branch
      %125 = sbr.rel (0) target = $region21
    $region20: #{tpu_custom_call.1} parent=1 // pred_region
      %s127 = ssub.s32 512, 512
      %128 = vsyncadd [#allocation4], %s127
      %s129 = sshll.u32 [#allocation7], 4
      %s130 = int_to_ptr.vmem [resolvable:$true] %s129
      %135 = dma.vmem_to_hbm [thread:$0]  %s130, 512, %s2, [#allocation4], 128, 128, 8
    $region21: #{tpu_custom_call.1} parent=1 // pred_fallthru
      _
    // Predicated region
    $region22: #{tpu_custom_call.1} parent=1 // pred_check
      _
    $region23: #{tpu_custom_call.1} parent=1 // pred_check_branch
      %137 = sbr.rel (0) target = $region25
    $region24: #{tpu_custom_call.1} parent=1 // pred_region
      %138 = dma.done [#allocation4], 512
    $region25: #{tpu_custom_call.1} parent=1 // pred_fallthru
      _
    %139 = vsyncpa [#allocation3], 1
    %140 = vsyncpa [#allocation6], 1
    %141 = vsyncpa [#allocation4], 1

</llo_original>
